<compile_context>
chip_gen: v6e
topology: v6e:2x2x1
jax: 0.10.0
libtpu: 0.0.40
codegen_flags: <defaults>
</compile_context>

<pallas_src>
import functools

import jax
import jax.numpy as jnp
from jax.experimental import pallas as pl
from jax.experimental.pallas import tpu as pltpu


# -----------------------------------------------------------------------------
# Pass 1: stats partials.  x:(Cin,t) -> h1:(ndf,t); write per-tile
#   s = sum over pixels of h1   (ndf, 1)
#   G = h1 @ h1^T               (ndf, ndf), f32 accumulate, K = tile
# h2 is never materialized here; no padding mask (host-side correction).
# -----------------------------------------------------------------------------
def _stage1_stats_kernel(x_ref, w1_ref, b1_ref, s_ref, g_ref):
    x = x_ref[...]                                                    # (Cin, t)
    h1 = jnp.dot(w1_ref[...], x, preferred_element_type=jnp.float32) + b1_ref[...]
    h1 = jnp.where(h1 > 0, h1, 0.2 * h1)                              # LeakyReLU(0.2), f32
    s_ref[...] = jnp.sum(h1, axis=1, keepdims=True)                   # (ndf, 1), tiny store
    # Gram matrix h1 @ h1^T: contract the pixel axis of both operands (MXU, K=t).
    g_ref[...] = jax.lax.dot_general(
        h1, h1, (((1,), (1,)), ((), ())), preferred_element_type=jnp.float32)


# -----------------------------------------------------------------------------
# Pass 2: recompute h1 from x, conv2 with BatchNorm scale folded into the
# weights / shift folded into the bias, LeakyReLU, conv3 on the MXU.
# -----------------------------------------------------------------------------
def _stage2_kernel(x_ref, w1_ref, b1_ref, w2s_ref, shift_ref, w3_ref, out_ref,
                   *, mxu_dtype):
    x = x_ref[...]                                                    # (Cin, t)
    h1 = jnp.dot(w1_ref[...], x, preferred_element_type=jnp.float32) + b1_ref[...]
    h1 = jnp.where(h1 > 0, h1, 0.2 * h1)                              # (ndf, t) f32
    h2 = jnp.dot(w2s_ref[...], h1.astype(mxu_dtype),
                 preferred_element_type=jnp.float32) + shift_ref[...]  # conv2 + folded BN
    hn = jnp.where(h2 > 0, h2, 0.2 * h2)                              # (C2, t) f32
    out_ref[...] = jnp.dot(w3_ref[...], hn.astype(mxu_dtype),
                           preferred_element_type=jnp.float32)         # (1, t) lane-dense


def pixel_discriminator_forward(x_nchw, params, *, tm=8192, use_bf16=False):
    """Forward pass of PixelDiscriminator.  x_nchw: (N, Cin, H, W) float32.

    tm:       pixel-tile size (rounded to a multiple of 128).  8192 amortizes
              the ~0.35 us per-grid-step overhead and fits the raised 32 MiB
              scoped-VMEM budget on v5e / v6e / v7x at ndf=64.
    use_bf16: cast MXU operands to bf16 (f32 accumulation + f32 elementwise),
              which runs the MXU at full rate on v5e/v6e/v7x.
    """
    w1, b1, w2 = params["w1"], params["b1"], params["w2"]
    gamma, beta, w3 = params["gamma"], params["beta"], params["w3"]

    N, Cin, H, W = x_nchw.shape
    ndf = w1.shape[0]
    C2 = w2.shape[0]
    HW = H * W
    M = N * HW
    eps = 1e-5
    hp = jax.lax.Precision.HIGHEST
    mxu_dtype = jnp.bfloat16 if use_bf16 else jnp.float32

    # Native layout: view as (N, Cin, H*W) -- free reshape, no transpose copy.
    x3 = x_nchw.reshape(N, Cin, HW)
    if use_bf16:
        x3 = x3.astype(mxu_dtype)   # halves x HBM traffic (x is read by both passes)

    # Tile the pixel axis (multiples of 128); pad each image's tail if ragged.
    lanes = 128
    tm = max(lanes, (int(tm) // lanes) * lanes)
    t_hw = min(tm, pl.cdiv(HW, lanes) * lanes)
    HW_pad = pl.cdiv(HW, t_hw) * t_hw
    if HW_pad != HW:
        x3 = jnp.pad(x3, ((0, 0), (0, 0), (0, HW_pad - HW)))
    num_hw_tiles = HW_pad // t_hw
    # Grid (N, hw_tiles): both axes independent -> megacore/parallel shardable
    # (grid size is N*num_hw_tiles >= 2 for any N >= 2, keeping both v7x TCs busy).
    grid = (N, num_hw_tiles)

    cparams = pltpu.CompilerParams(
        dimension_semantics=("parallel", "parallel"),
        vmem_limit_bytes=32 * 1024 * 1024)

    w1c = w1.astype(mxu_dtype)
    b1c = b1.reshape(ndf, 1).astype(jnp.float32)

    x_spec = pl.BlockSpec((pl.Squeezed(), Cin, t_hw), lambda n, i: (n, 0, i))
    w1_spec = pl.BlockSpec((ndf, Cin), lambda n, i: (0, 0))
    b1_spec = pl.BlockSpec((ndf, 1), lambda n, i: (0, 0))

    # ---- pass 1: per-tile h1 sums + Gram matrix (BatchNorm batch stats) ----
    s_part, g_part = pl.pallas_call(
        _stage1_stats_kernel,
        grid=grid,
        in_specs=[x_spec, w1_spec, b1_spec],
        out_specs=[
            pl.BlockSpec((pl.Squeezed(), pl.Squeezed(), ndf, 1),
                         lambda n, i: (n, i, 0, 0)),
            pl.BlockSpec((pl.Squeezed(), pl.Squeezed(), ndf, ndf),
                         lambda n, i: (n, i, 0, 0)),
        ],
        out_shape=[
            jax.ShapeDtypeStruct((N, num_hw_tiles, ndf, 1), jnp.float32),
            jax.ShapeDtypeStruct((N, num_hw_tiles, ndf, ndf), jnp.float32),
        ],
        compiler_params=cparams,
    )(x3, w1c, b1c)

    # ---- host-side BatchNorm2d training stats (biased variance), O(ndf^2) ----
    S = jnp.sum(s_part, axis=(0, 1)).reshape(ndf)          # sum_m h1
    G = jnp.sum(g_part, axis=(0, 1))                        # sum_m h1 h1^T
    n_padded = N * (HW_pad - HW)
    if n_padded > 0:
        # Padded pixels have x = 0, so their h1 is exactly lrelu(b1): subtract.
        h1_pad = jnp.where(b1 > 0, b1, 0.2 * b1)
        S = S - n_padded * h1_pad
        G = G - n_padded * jnp.outer(h1_pad, h1_pad)
    w2f = w2.astype(jnp.float32)
    sum_h2 = jnp.dot(w2f, S, precision=hp)                              # (C2,)
    sumsq_h2 = jnp.sum(jnp.dot(w2f, G, precision=hp) * w2f, axis=1)     # (C2,)
    mean = sum_h2 / M
    var = sumsq_h2 / M - mean * mean
    inv = jax.lax.rsqrt(var + eps)
    scale = gamma * inv
    shift = (beta - mean * scale).reshape(C2, 1).astype(jnp.float32)
    w2_scaled = (w2f * scale[:, None]).astype(mxu_dtype)   # fold BN scale into conv2
    w3c = w3.reshape(1, C2).astype(mxu_dtype)

    # ---- pass 2: fused conv1 -> lrelu -> conv2(+BN) -> lrelu -> conv3 -------
    stage2 = functools.partial(_stage2_kernel, mxu_dtype=mxu_dtype)
    out3d = pl.pallas_call(
        stage2,
        grid=grid,
        in_specs=[
            x_spec, w1_spec, b1_spec,
            pl.BlockSpec((C2, ndf), lambda n, i: (0, 0)),
            pl.BlockSpec((C2, 1), lambda n, i: (0, 0)),
            pl.BlockSpec((1, C2), lambda n, i: (0, 0)),
        ],
        out_specs=pl.BlockSpec((pl.Squeezed(), 1, t_hw), lambda n, i: (n, 0, i)),
        out_shape=jax.ShapeDtypeStruct((N, 1, HW_pad), jnp.float32),
        compiler_params=cparams,
    )(x3, w1c, b1c, w2_scaled, shift, w3c)

    # Slice off any padded tail and restore (N, 1, H, W).
    return out3d[:, :, :HW].reshape(N, 1, H, W)


def init_params(key, input_nc, ndf):
    """Deterministic synthetic parameters matching the module's shapes.

    PyTorch conv weights are (Cout, Cin, 1, 1); stored here as (Cout, Cin).
    norm_layer = BatchNorm2d  =>  use_bias = False for conv2 / conv3.
    """
    k1, k2, k3, k4 = jax.random.split(key, 4)
    C2 = ndf * 2
    return {
        "w1": 0.1 * jax.random.normal(k1, (ndf, input_nc), jnp.float32),
        "b1": 0.1 * jax.random.normal(k2, (ndf,), jnp.float32),
        "w2": 0.1 * jax.random.normal(k3, (C2, ndf), jnp.float32),
        "gamma": jnp.ones((C2,), jnp.float32),     # BatchNorm2d affine init
        "beta": jnp.zeros((C2,), jnp.float32),
        "w3": 0.1 * jax.random.normal(k4, (1, C2), jnp.float32),
    }


def _reference_forward(x_nchw, params):
    """Pure-JAX reference of the same forward (high-precision matmuls)."""
    hp = jax.lax.Precision.HIGHEST
    N, Cin, H, W = x_nchw.shape
    x = jnp.transpose(x_nchw, (0, 2, 3, 1)).reshape(-1, Cin)
    h1 = jnp.dot(x, params["w1"].T, precision=hp) + params["b1"]
    h1 = jnp.where(h1 > 0, h1, 0.2 * h1)
    h2 = jnp.dot(h1, params["w2"].T, precision=hp)
    mean = h2.mean(axis=0, keepdims=True)
    var = h2.var(axis=0, keepdims=True)            # biased, like BatchNorm training
    hn = (h2 - mean) / jnp.sqrt(var + 1e-5) * params["gamma"] + params["beta"]
    hn = jnp.where(hn > 0, hn, 0.2 * hn)
    out = jnp.dot(hn, params["w3"].T, precision=hp)
    return jnp.transpose(out.reshape(N, H, W, 1), (0, 3, 1, 2))


if __name__ == "__main__":
    key = jax.random.PRNGKey(0)
    kx, kx2, kp = jax.random.split(key, 3)

    # Small shapes consistent with the module: N=2, input_nc=4, H=W=16, ndf=16.
    N, input_nc, H, W = 2, 4, 16, 16
    ndf = 16
    params = init_params(kp, input_nc, ndf)

    x = jax.random.normal(kx, (N, input_nc, H, W), jnp.float32)
    out = pixel_discriminator_forward(x, params)
    out = jax.block_until_ready(out)
    ref = _reference_forward(x, params)
    assert out.shape == (N, 1, H, W)
    assert jnp.allclose(out, ref, atol=1e-3, rtol=1e-3)

    # Ragged spatial size (exercises padding + host-side stats correction).
    H2, W2 = 15, 15
    x2 = jax.random.normal(kx2, (N, input_nc, H2, W2), jnp.float32)
    out2 = pixel_discriminator_forward(x2, params, tm=256)
    out2 = jax.block_until_ready(out2)
    ref2 = _reference_forward(x2, params)
    assert out2.shape == (N, 1, H2, W2)
    assert jnp.allclose(out2, ref2, atol=1e-3, rtol=1e-3)

    # bf16 MXU-operand path (f32 accumulate / elementwise); looser tolerance.
    out3 = pixel_discriminator_forward(x, params, use_bf16=True)
    out3 = jax.block_until_ready(out3)
    assert out3.shape == (N, 1, H, W)
    assert jnp.allclose(out3, ref, atol=1e-1, rtol=1e-1)

    print("KERNEL_OK")
</pallas_src>

<mosaic_0001>
module attributes {stable_mosaic.version = 11 : i64} {
  func.func @_stage1_stats_kernel(%arg0: i32, %arg1: i32, %arg2: memref<1x4x256xf32, #tpu.memory_space<vmem>>, %arg3: memref<16x4xf32, #tpu.memory_space<vmem>>, %arg4: memref<16x1xf32, #tpu.memory_space<vmem>>, %arg5: memref<1x1x16x1xf32, #tpu.memory_space<vmem>>, %arg6: memref<1x1x16x16xf32, #tpu.memory_space<vmem>>) attributes {dimension_semantics = [#tpu.dimension_semantics<parallel>, #tpu.dimension_semantics<parallel>], iteration_bounds = array<i64: 2, 1>, scalar_prefetch = 0 : i64, scratch_operands = 0 : i64, tpu.core_type = #tpu.core_type<tc>, window_params = [{transform_indices = @transform_0, window_bounds = array<i64: 1, 4, 256>}, {pipeline_mode = #tpu.pipeline_mode<synchronous>, transform_indices = @transform_1, window_bounds = array<i64: 16, 4>}, {pipeline_mode = #tpu.pipeline_mode<synchronous>, transform_indices = @transform_2, window_bounds = array<i64: 16, 1>}, {transform_indices = @transform_3, window_bounds = array<i64: 1, 1, 16, 1>}, {transform_indices = @transform_4, window_bounds = array<i64: 1, 1, 16, 16>}]} {
    %c0 = arith.constant 0 : index
    %c0_0 = arith.constant 0 : index
    %c0_1 = arith.constant 0 : index
    %0 = vector.load %arg2[%c0, %c0_0, %c0_1] : memref<1x4x256xf32, #tpu.memory_space<vmem>>, vector<1x4x256xf32>
    %1 = vector.shape_cast %0 : vector<1x4x256xf32> to vector<4x256xf32>
    %c0_2 = arith.constant 0 : index
    %c0_3 = arith.constant 0 : index
    %2 = vector.load %arg3[%c0_2, %c0_3] : memref<16x4xf32, #tpu.memory_space<vmem>>, vector<16x4xf32>
    %cst = arith.constant dense<0.000000e+00> : vector<16x256xf32>
    %3 = tpu.matmul %2, %1, %cst {dimension_numbers = #tpu.dot_dimension_numbers<[1], [0], [0], [1], [0, 0, 1, 1], [], []>} : vector<16x4xf32>, vector<4x256xf32>, vector<16x256xf32> -> vector<16x256xf32>
    %c0_4 = arith.constant 0 : index
    %c0_5 = arith.constant 0 : index
    %4 = vector.load %arg4[%c0_4, %c0_5] : memref<16x1xf32, #tpu.memory_space<vmem>>, vector<16x1xf32>
    %5 = vector.broadcast %4 : vector<16x1xf32> to vector<16x256xf32>
    %6 = arith.addf %3, %5 : vector<16x256xf32>
    %cst_6 = arith.constant 0.000000e+00 : f32
    %7 = vector.broadcast %cst_6 : f32 to vector<16x256xf32>
    %8 = arith.cmpf ogt, %6, %7 : vector<16x256xf32>
    %cst_7 = arith.constant 2.000000e-01 : f32
    %9 = vector.broadcast %cst_7 : f32 to vector<16x256xf32>
    %10 = arith.mulf %9, %6 : vector<16x256xf32>
    %11 = arith.select %8, %6, %10 : vector<16x256xi1>, vector<16x256xf32>
    %cst_8 = arith.constant dense<0.000000e+00> : vector<16xf32>
    %12 = vector.multi_reduction <add>, %11, %cst_8 [1] : vector<16x256xf32> to vector<16xf32>
    %13 = vector.shape_cast %12 : vector<16xf32> to vector<16x1xf32>
    %c0_9 = arith.constant 0 : index
    %c0_10 = arith.constant 0 : index
    %c0_11 = arith.constant 0 : index
    %c0_12 = arith.constant 0 : index
    %14 = vector.load %arg5[%c0_9, %c0_10, %c0_11, %c0_12] : memref<1x1x16x1xf32, #tpu.memory_space<vmem>>, vector<1x1x16x1xf32>
    %15 = vector.shape_cast %14 : vector<1x1x16x1xf32> to vector<16x1xf32>
    %16 = vector.shape_cast %13 : vector<16x1xf32> to vector<1x1x16x1xf32>
    tpu.vector_store %arg5[%c0_9, %c0_10, %c0_11, %c0_12], %16 {strides = array<i32>} : memref<1x1x16x1xf32, #tpu.memory_space<vmem>>, vector<1x1x16x1xf32>,
    %cst_13 = arith.constant dense<0.000000e+00> : vector<16x16xf32>
    %17 = tpu.matmul %11, %11, %cst_13 {dimension_numbers = #tpu.dot_dimension_numbers<[1], [1], [0], [0], [0, 0, 1, 0], [], []>} : vector<16x256xf32>, vector<16x256xf32>, vector<16x16xf32> -> vector<16x16xf32>
    %c0_14 = arith.constant 0 : index
    %c0_15 = arith.constant 0 : index
    %c0_16 = arith.constant 0 : index
    %c0_17 = arith.constant 0 : index
    %18 = vector.load %arg6[%c0_14, %c0_15, %c0_16, %c0_17] : memref<1x1x16x16xf32, #tpu.memory_space<vmem>>, vector<1x1x16x16xf32>
    %19 = vector.shape_cast %18 : vector<1x1x16x16xf32> to vector<16x16xf32>
    %20 = vector.shape_cast %17 : vector<16x16xf32> to vector<1x1x16x16xf32>
    tpu.vector_store %arg6[%c0_14, %c0_15, %c0_16, %c0_17], %20 {strides = array<i32>} : memref<1x1x16x16xf32, #tpu.memory_space<vmem>>, vector<1x1x16x16xf32>,
    return
  }
  func.func @transform_0(%arg0: i32, %arg1: i32) -> (i32, i32, i32) {
    %c0_i32 = arith.constant 0 : i32
    %c0_i32_0 = arith.constant 0 : i32
    return %arg0, %c0_i32, %arg1 : i32, i32, i32
  }
  func.func @transform_1(%arg0: i32, %arg1: i32) -> (i32, i32) {
    %c0_i32 = arith.constant 0 : i32
    %c0_i32_0 = arith.constant 0 : i32
    %c0_i32_1 = arith.constant 0 : i32
    return %c0_i32, %c0_i32_0 : i32, i32
  }
  func.func @transform_2(%arg0: i32, %arg1: i32) -> (i32, i32) {
    %c0_i32 = arith.constant 0 : i32
    %c0_i32_0 = arith.constant 0 : i32
    %c0_i32_1 = arith.constant 0 : i32
    return %c0_i32, %c0_i32_0 : i32, i32
  }
  func.func @transform_3(%arg0: i32, %arg1: i32) -> (i32, i32, i32, i32) {
    %c0_i32 = arith.constant 0 : i32
    %c0_i32_0 = arith.constant 0 : i32
    %c0_i32_1 = arith.constant 0 : i32
    return %arg0, %arg1, %c0_i32, %c0_i32_0 : i32, i32, i32, i32
  }
  func.func @transform_4(%arg0: i32, %arg1: i32) -> (i32, i32, i32, i32) {
    %c0_i32 = arith.constant 0 : i32
    %c0_i32_0 = arith.constant 0 : i32
    %c0_i32_1 = arith.constant 0 : i32
    return %arg0, %arg1, %c0_i32, %c0_i32_0 : i32, i32, i32, i32
  }
}

</mosaic_0001>

<llo_original>
// kernel: tpu_custom_call.1
$region0: #{tpu_custom_call.1}
  #allocation0 [shape = 'u32[]', space=smem, size = 0x4, offset = 0x4, fixed_abs, tag = 'smem constant byte address 0x4 - core index']
  #allocation1 [shape = 'u32[144,128]{1,0:T(1,128)}', space=vmem, size = 0x12000, scoped, tag = 'internal scratch']
  %s0 = inlined_call_operand.vmem [shape: f32[2,4,256], index: 0, kind: input, shape index: {}]
  %s1 = inlined_call_operand.vmem [shape: f32[16,4], index: 1, kind: input, shape index: {}]
  %s2 = inlined_call_operand.vmem [shape: f32[16,1], index: 2, kind: input, shape index: {}]
  %s3 = inlined_call_operand.vmem [shape: f32[2,1,16,1], index: 3, kind: output, shape index: {0}]
  %s4 = inlined_call_operand.hbm [shape: f32[2,1,16,16], index: 4, kind: output, shape index: {1}]
  %5 = xla_tuple %s3, %s4
  %s6 = sld [smem:[#allocation0]]
  $region53: #{tpu_custom_call.1} parent=0
    _
  %s8 = ssub.s32 1, %s6
  %s9 = scalar_select 0, %s8, %s6
  $region1: #{tpu_custom_call.1} parent=0
    #allocation2 [shape = 'u8[16384]{0}', space=vmem, size = 0x4000, scoped, tag = 'output window, operand 1']
    #allocation3 [shape = 's32[2]{0}', space=sflag, size = 0x8, scoped, tag = 'scoped memory for tpu_custom_call.1']
    %10 = vsyncpa [#allocation3], 0
    %s11 = scalar_lea.sflag [#allocation3], 1
    %12 = vsyncpa %s11, 0
    loop: start=0, step=1, limit=4
    $region2: #{tpu_custom_call.1} parent=1 // loop_pre_header
      _
    $region3: #{tpu_custom_call.1} parent=1 // loop_header
      %s14 = sphi 0, %s18
      %p15 = scmp.ge.s32.totalorder %s14, 4
      %s21 = sphi 0, %s33
      %s22 = sphi 0, %s29
      %s23 = sphi 0, %s21
      %s24 = sphi 0, %s22
      %s25 = sphi 0, %s23
      %s26 = sphi 0, %s24
      %s38 = sphi 0, %s40
      %s41 = sphi 0, %s38
      %s42 = sphi 0, %s41
      %s58 = sphi 0, %s42
      %s62 = sphi 0, %s62
      %s64 = sphi 0, %s62
      %s65 = sphi 0, %s64
      %s79 = sphi 0, %s65
      %s83 = sphi 0, %s83
      %s85 = sphi 0, %s83
      %s86 = sphi 0, %s85
      %s100 = sphi 0, %s86
      %s108 = sphi 0, %s110
      %s111 = sphi 0, %s108
      %s112 = sphi 0, %s111
      %s128 = sphi 0, %s112
      %s136 = sphi 0, %s138
      %s139 = sphi 0, %s136
      %s140 = sphi 0, %s139
      %s156 = sphi 0, %s140
    $region4: #{tpu_custom_call.1} parent=1 // loop_header_branch
      %17 = sbr.rel (%p15) target = $region8
    $region5: #{tpu_custom_call.1} parent=1 // loop_body
      %s19 = ssub.s32 %s14, 1
      %s20 = ssub.s32 %s14, 2
      %s27 = sadd.s32 1, %s22
      %p28 = scmp.ge.s32.totalorder %s27, 1
      %s29 = scalar_select %p28, 0, %s27
      %s30 = sadd.s32 1, %s21
      %s31 = scalar_select %p28, %s30, %s21
      %p32 = scmp.ge.s32.totalorder %s31, 2
      %s33 = scalar_select %p32, 0, %s31
      %s34 = ssub.s32 %s21, %s33
      %s35 = ssub.s32 %s22, %s29
      %s36 = sor.u32 %s34, %s35
      %p37 = scmp.eq.s32.totalorder %s36, 0
      %s39 = sadd.s32 %s38, 1
      %s40 = scalar_select %p37, %s38, %s39
      %p43 = pneg %p37
      %p44 = scmp.eq.s32.totalorder %s14, 1
      %p45 = por %p43, %p44
      %p46 = scmp.ne.s32.totalorder %s38, %s41
      %p47 = scmp.eq.s32.totalorder %s14, 0
      %p48 = por %p46, %p47
      %p49 = scmp.ne.s32.totalorder %s38, %s41
      %p50 = scmp.eq.s32.totalorder %s19, 1
      %p51 = por %p49, %p50
      %p52 = scmp.ne.s32.totalorder %s41, %s42
      %p53 = scmp.eq.s32.totalorder %s19, 0
      %p54 = por %p52, %p53
      %p55 = scmp.ne.s32.totalorder %s41, %s42
      %p56 = scmp.eq.s32.totalorder %s20, 1
      %p57 = por %p55, %p56
      %p59 = scmp.ne.s32.totalorder %s42, %s58
      %p60 = scmp.eq.s32.totalorder %s20, 0
      %p61 = por %p59, %p60
      %s63 = sadd.s32 %s62, 1
      %p66 = scmp.eq.s32.totalorder %s14, 1
      %p67 = scmp.ne.s32.totalorder %s62, %s64
      %p68 = scmp.eq.s32.totalorder %s14, 0
      %p69 = por %p67, %p68
      %p70 = scmp.ne.s32.totalorder %s62, %s64
      %p71 = scmp.eq.s32.totalorder %s19, 1
      %p72 = por %p70, %p71
      %p73 = scmp.ne.s32.totalorder %s64, %s65
      %p74 = scmp.eq.s32.totalorder %s19, 0
      %p75 = por %p73, %p74
      %p76 = scmp.ne.s32.totalorder %s64, %s65
      %p77 = scmp.eq.s32.totalorder %s20, 1
      %p78 = por %p76, %p77
      %p80 = scmp.ne.s32.totalorder %s65, %s79
      %p81 = scmp.eq.s32.totalorder %s20, 0
      %p82 = por %p80, %p81
      %s84 = sadd.s32 %s83, 1
      %p87 = scmp.eq.s32.totalorder %s14, 1
      %p88 = scmp.ne.s32.totalorder %s83, %s85
      %p89 = scmp.eq.s32.totalorder %s14, 0
      %p90 = por %p88, %p89
      %p91 = scmp.ne.s32.totalorder %s83, %s85
      %p92 = scmp.eq.s32.totalorder %s19, 1
      %p93 = por %p91, %p92
      %p94 = scmp.ne.s32.totalorder %s85, %s86
      %p95 = scmp.eq.s32.totalorder %s19, 0
      %p96 = por %p94, %p95
      %p97 = scmp.ne.s32.totalorder %s85, %s86
      %p98 = scmp.eq.s32.totalorder %s20, 1
      %p99 = por %p97, %p98
      %p101 = scmp.ne.s32.totalorder %s86, %s100
      %p102 = scmp.eq.s32.totalorder %s20, 0
      %p103 = por %p101, %p102
      %s104 = ssub.s32 %s21, %s33
      %s105 = ssub.s32 %s22, %s29
      %s106 = sor.u32 %s104, %s105
      %p107 = scmp.eq.s32.totalorder %s106, 0
      %s109 = sadd.s32 %s108, 1
      %s110 = scalar_select %p107, %s108, %s109
      %p113 = pneg %p107
      %p114 = scmp.eq.s32.totalorder %s14, 1
      %p115 = por %p113, %p114
      %p116 = scmp.ne.s32.totalorder %s108, %s111
      %p117 = scmp.eq.s32.totalorder %s14, 0
      %p118 = por %p116, %p117
      %p119 = scmp.ne.s32.totalorder %s108, %s111
      %p120 = scmp.eq.s32.totalorder %s19, 1
      %p121 = por %p119, %p120
      %p122 = scmp.ne.s32.totalorder %s111, %s112
      %p123 = scmp.eq.s32.totalorder %s19, 0
      %p124 = por %p122, %p123
      %p125 = scmp.ne.s32.totalorder %s111, %s112
      %p126 = scmp.eq.s32.totalorder %s20, 1
      %p127 = por %p125, %p126
      %p129 = scmp.ne.s32.totalorder %s112, %s128
      %p130 = scmp.eq.s32.totalorder %s20, 0
      %p131 = por %p129, %p130
      %s132 = ssub.s32 %s21, %s33
      %s133 = ssub.s32 %s22, %s29
      %s134 = sor.u32 %s132, %s133
      %p135 = scmp.eq.s32.totalorder %s134, 0
      %s137 = sadd.s32 %s136, 1
      %s138 = scalar_select %p135, %s136, %s137
      %p141 = pneg %p135
      %p142 = scmp.eq.s32.totalorder %s14, 1
      %p143 = por %p141, %p142
      %p144 = scmp.ne.s32.totalorder %s136, %s139
      %p145 = scmp.eq.s32.totalorder %s14, 0
      %p146 = por %p144, %p145
      %p147 = scmp.ne.s32.totalorder %s136, %s139
      %p148 = scmp.eq.s32.totalorder %s19, 1
      %p149 = por %p147, %p148
      %p150 = scmp.ne.s32.totalorder %s139, %s140
      %p151 = scmp.eq.s32.totalorder %s19, 0
      %p152 = por %p150, %p151
      %p153 = scmp.ne.s32.totalorder %s139, %s140
      %p154 = scmp.eq.s32.totalorder %s20, 1
      %p155 = por %p153, %p154
      %p157 = scmp.ne.s32.totalorder %s140, %s156
      %p158 = scmp.eq.s32.totalorder %s20, 0
      %p159 = por %p157, %p158
      %p160 = scmp.le.s32.totalorder 1, %s14
      %p161 = scmp.lt.s32.totalorder %s14, 3
      %p162 = pnand %p160, %p161
      %p163 = pneg %p162
      // Predicated region
      $region9: #{tpu_custom_call.1} parent=5 // pred_check
        _
      $region10: #{tpu_custom_call.1} parent=5 // pred_check_branch
        %165 = sbr.rel (%p162) target = $region12
      $region11: #{tpu_custom_call.1} parent=5 // pred_region
        %s166 = ssub.s32 %s14, 1
        // Predicated region
        $region13: #{tpu_custom_call.1} parent=11 // pred_check
          %p167 = pneg %p75
        $region14: #{tpu_custom_call.1} parent=11 // pred_check_branch
          %169 = sbr.rel (%p167) target = $region16
        $region15: #{tpu_custom_call.1} parent=11 // pred_region
          _
        $region16: #{tpu_custom_call.1} parent=11 // pred_fallthru
          _
        // Predicated region
        $region17: #{tpu_custom_call.1} parent=11 // pred_check
          %p170 = pneg %p96
        $region18: #{tpu_custom_call.1} parent=11 // pred_check_branch
          %172 = sbr.rel (%p170) target = $region20
        $region19: #{tpu_custom_call.1} parent=11 // pred_region
          _
        $region20: #{tpu_custom_call.1} parent=11 // pred_fallthru
          _
      $region12: #{tpu_custom_call.1} parent=5 // pred_fallthru
        _
      %p173 = scmp.lt.s32.totalorder %s14, 2
      // Predicated region
      $region21: #{tpu_custom_call.1} parent=5 // pred_check
        %p174 = pneg %p173
      $region22: #{tpu_custom_call.1} parent=5 // pred_check_branch
        %176 = sbr.rel (%p174) target = $region24
      $region23: #{tpu_custom_call.1} parent=5 // pred_region
        // Predicated region
        $region25: #{tpu_custom_call.1} parent=23 // pred_check
          %p177 = pneg %p48
        $region26: #{tpu_custom_call.1} parent=23 // pred_check_branch
          %179 = sbr.rel (%p177) target = $region28
        $region27: #{tpu_custom_call.1} parent=23 // pred_region
          %s180 = smul.u32 2, %s22
          %p181 = scmp.lt.s32.totalorder %s21, 1
          %s182 = scalar_select %p181, %s21, 1
          %p183 = scmp.lt.s32.totalorder %s180, 1
          %s184 = scalar_select %p183, %s180, 1
          %s185 = smul.addr %s182, 2
          %s186 = sadd.s32 %s184, %s185
          %s187 = smul.addr %s186, 4
          %s188 = scalar_lea.vmem %s0, %s187
          %s189 = smul.u32 2, %s22
        $region28: #{tpu_custom_call.1} parent=23 // pred_fallthru
          _
      $region24: #{tpu_custom_call.1} parent=5 // pred_fallthru
        _
      %p190 = scmp.le.s32.totalorder 1, %s14
      %p191 = scmp.lt.s32.totalorder %s14, 3
      %p192 = pnand %p190, %p191
      %p193 = pneg %p192
      // Predicated region
      $region29: #{tpu_custom_call.1} parent=5 // pred_check
        _
      $region30: #{tpu_custom_call.1} parent=5 // pred_check_branch
        %195 = sbr.rel (%p192) target = $region32
      $region31: #{tpu_custom_call.1} parent=5 // pred_region
        %s196 = ssub.s32 %s14, 1
        %s197 = smul.u32 2, %s24
        %p198 = scmp.lt.s32.totalorder %s23, 1
        %s199 = scalar_select %p198, %s23, 1
        %p200 = scmp.lt.s32.totalorder %s197, 1
        %s201 = scalar_select %p200, %s197, 1
        %s202 = smul.addr %s199, 2
        %s203 = sadd.s32 %s201, %s202
        %s204 = smul.addr %s203, 4
        %s205 = scalar_lea.vmem %s0, %s204
        %p206 = pneg %p54
        %p207 = pneg %p51
        %p208 = pneg %p75
        %p209 = pneg %p72
        %p210 = pneg %p96
        %p211 = pneg %p93
        %p212 = pneg %p124
        %p213 = pneg %p121
        %p214 = scmp.lt.s32.totalorder %s23, 1
        %s215 = scalar_select %p214, %s23, 1
        %p216 = scmp.lt.s32.totalorder %s24, 0
        %s217 = scalar_select %p216, %s24, 0
        %s218 = smul.addr %s217, 2
        %s219 = smul.addr %s215, 2
        %s220 = sadd.s32 %s218, %s219
        %s221 = smul.addr %s220, 8
        %s222 = scalar_lea.vmem %s3, %s221
        %p223 = pneg %p152
        %p224 = pneg %p149
        %s225 = sand.u32 %s139, 1
        %s226 = scalar_lea.sflag [#allocation3], %s225
        %s227 = sand.u32 %s139, 1
        %s228 = smul.addr %s227, 16
        %s229 = scalar_lea.vmem [#allocation2], %s228
        %s230 = smul.u32 2, %s24
        %p231 = scmp.lt.s32.totalorder %s23, 1
        %s232 = scalar_select %p231, %s23, 1
        %p233 = scmp.lt.s32.totalorder %s230, 1
        %s234 = scalar_select %p233, %s230, 1
        %s235 = smul.addr %s232, 2
        %s236 = sadd.s32 %s234, %s235
        %s237 = smul.addr %s236, 4
        %s238 = scalar_lea.vmem %s0, %s237
        %s239 = smul.u32 2, %s24
        %p240 = scmp.lt.s32.totalorder %s23, 1
        %s241 = scalar_select %p240, %s23, 1
        %p242 = scmp.lt.s32.totalorder %s24, 0
        %s243 = scalar_select %p242, %s24, 0
        %s244 = smul.addr %s243, 2
        %s245 = smul.addr %s241, 2
        %s246 = sadd.s32 %s244, %s245
        %s247 = smul.addr %s246, 8
        %s248 = scalar_lea.vmem %s3, %s247
        %v249 = vld [vmem:[%s238] sm:$0xff]
        %v250 = vld [vmem:[%s1] sm:$0xff]
        %v251 = vld [vmem:[%s1 + $0x8] sm:$0xff]
        %v252 = vld [vmem:[%s2] sm:$0xff]
        %v253 = vld [vmem:[%s2 + $0x8] sm:$0xff]
        %255 = vset.pattern.permute.xlu0 0
        %256 = vperm.xlu0 %255, %v252
        %v257 = vpop.permute.xlu0 %256
        %260 = vset.pattern.permute.xlu0 0
        %261 = vperm.xlu0 %260, %v253
        %v262 = vpop.permute.xlu0 %261
        %v265 = vcombine.high %v249, %v249
        %vm266 = vcmask 31744
        %v268 = vsel %vm266, %v250, 0
        %v271 = vsel %vm266, %v251, 0
        %vm273 = vcmask 1043456
        %v274 = vsel %vm273, %v249, 0
        %v276 = vsel %vm273, %v265, 0
        %278 = vmatprep.subr.mxu0 0.0
        %279 = vmatpush1.msra.mxu0 0.0
        %280 = vmatprep.subr.mxu0 0.0
        %281 = vmatpush1.msra.mxu0 0.0
        %282 = vmatprep.subr.mxu0 0.0
        %283 = vmatpush1.msra.mxu0 0.0
        %284 = vmatprep.subr.mxu0 0.0
        %285 = vmatpush1.msra.mxu0 0.0
        %286 = vmatprep.subr.mxu0 0.0
        %287 = vmatpush1.msra.mxu0 0.0
        %288 = vmatprep.subr.mxu0 0.0
        %289 = vmatpush1.msra.mxu0 0.0
        %290 = vmatprep.subr.mxu0 0.0
        %291 = vmatpush1.msra.mxu0 0.0
        %292 = vmatprep.subr.mxu0 0.0
        %293 = vmatpush1.msra.mxu0 0.0
        %294 = vmatprep.subr.mxu0 0.0
        %295 = vmatpush1.msra.mxu0 0.0
        %296 = vmatprep.subr.mxu0 0.0
        %297 = vmatpush1.msra.mxu0 0.0
        %298 = vmatprep.subr.mxu0 0.0
        %299 = vmatpush1.msra.mxu0 0.0
        %300 = vmatprep.subr.mxu0 0.0
        %301 = vmatpush1.msra.mxu0 0.0
        %302 = vmatprep.subr.mxu0 0.0
        %303 = vmatpush1.msra.mxu0 0.0
        %304 = vmatprep.subr.mxu0 0.0
        %305 = vmatpush1.msra.mxu0 0.0
        %306 = vmatprep.subr.mxu0 0.0
        %307 = vmatpush1.msra.mxu0 0.0
        %308 = vmatprep.subr.mxu0 %v276
        %309 = vmatpush1.msra.mxu0 %v274
        %310 = vmatprep.subr.mxu0 0.0
        %311 = vmatpush2.msra.mxu0 0.0
        %312 = vmatprep.subr.mxu0 0.0
        %313 = vmatpush2.msra.mxu0 0.0
        %314 = vmatprep.subr.mxu0 0.0
        %315 = vmatpush2.msra.mxu0 0.0
        %316 = vmatprep.subr.mxu0 0.0
        %317 = vmatpush2.msra.mxu0 0.0
        %318 = vmatprep.subr.mxu0 0.0
        %319 = vmatpush2.msra.mxu0 0.0
        %320 = vmatprep.subr.mxu0 0.0
        %321 = vmatpush2.msra.mxu0 0.0
        %322 = vmatprep.subr.mxu0 0.0
        %323 = vmatpush2.msra.mxu0 0.0
        %324 = vmatprep.subr.mxu0 0.0
        %325 = vmatpush2.msra.mxu0 0.0
        %326 = vmatprep.subr.mxu0 0.0
        %327 = vmatpush2.msra.mxu0 0.0
        %328 = vmatprep.subr.mxu0 0.0
        %329 = vmatpush2.msra.mxu0 0.0
        %330 = vmatprep.subr.mxu0 0.0
        %331 = vmatpush2.msra.mxu0 0.0
        %332 = vmatprep.subr.mxu0 0.0
        %333 = vmatpush2.msra.mxu0 0.0
        %334 = vmatprep.subr.mxu0 0.0
        %335 = vmatpush2.msra.mxu0 0.0
        %336 = vmatprep.subr.mxu0 0.0
        %337 = vmatpush2.msra.mxu0 0.0
        %338 = vmatprep.subr.mxu0 0.0
        %339 = vmatpush2.msra.mxu0 0.0
        %340 = vmatprep.subr.mxu0 0.0
        %341 = vmatpush2.msra.mxu0 0.0
        %342 = vmatprep.mubr.f32.mxu0 0.0
        %343 = vmatmul.mubr.f32.gmra.mxu0 %v268
        %v344 = vpop.f32.mrf.mxu0
        %v345 = vadd.f32 %v257, %v344
        %v346 = vpop.f32.mrf.mxu0
        %v347 = vadd.f32 %v257, %v346
        %348 = vmatprep.mubr.f32.mxu0 0.0
        %349 = vmatmul.mubr.f32.gmra.mxu0 %v271
        %v350 = vpop.f32.mrf.mxu0
        %v351 = vadd.f32 %v262, %v350
        %v352 = vpop.f32.mrf.mxu0
        %v353 = vadd.f32 %v262, %v352
        %354 = vdwg.mxu0
        %vm355 = vcmp.gt.f32.partialorder %v345, 0.0
        %vm356 = vcmp.gt.f32.partialorder %v347, 0.0
        %vm357 = vcmp.gt.f32.partialorder %v351, 0.0
        %vm358 = vcmp.gt.f32.partialorder %v353, 0.0
        %v359 = vmul.f32 %v345, 0.2
        %v360 = vmul.f32 %v347, 0.2
        %v361 = vmul.f32 %v351, 0.2
        %v362 = vmul.f32 %v353, 0.2
        %v363 = vsel %vm355, %v345, %v359
        %v364 = vsel %vm356, %v347, %v360
        %v365 = vsel %vm357, %v351, %v361
        %v366 = vsel %vm358, %v353, %v362
        %v367 = vadd.f32 %v363, %v364
        %368 = vadd.xlane.f32.xlu0 %v367
        %v369 = vpop.xlane.xlu0 %368
        %v370 = vadd.f32 %v365, %v366
        %371 = vadd.xlane.f32.xlu0 %v370
        %v372 = vpop.xlane.xlu0 %371
        %vm373 = vcmask 7168
        %374 = vst.msk [vmem:[%s248] sm:$0xff] %vm373, %v369
        %375 = vst.msk [vmem:[%s248 + $0x8] sm:$0xff] %vm373, %v372
        %376 = vmatprep.subr.mxu0 0.0
        %377 = vmatpush1.xpose.msra.mxu0 0.0
        %378 = vmatprep.subr.mxu0 0.0
        %379 = vmatpush1.xpose.msra.mxu0 0.0
        %380 = vmatprep.subr.mxu0 0.0
        %381 = vmatpush1.xpose.msra.mxu0 0.0
        %382 = vmatprep.subr.mxu0 0.0
        %383 = vmatpush1.xpose.msra.mxu0 0.0
        %384 = vmatprep.subr.mxu0 0.0
        %385 = vmatpush1.xpose.msra.mxu0 0.0
        %386 = vmatprep.subr.mxu0 0.0
        %387 = vmatpush1.xpose.msra.mxu0 0.0
        %388 = vmatprep.subr.mxu0 0.0
        %389 = vmatpush1.xpose.msra.mxu0 0.0
        %390 = vmatprep.subr.mxu0 0.0
        %391 = vmatpush1.xpose.msra.mxu0 0.0
        %392 = vmatprep.subr.mxu0 0.0
        %393 = vmatpush1.xpose.msra.mxu0 0.0
        %394 = vmatprep.subr.mxu0 0.0
        %395 = vmatpush1.xpose.msra.mxu0 0.0
        %396 = vmatprep.subr.mxu0 0.0
        %397 = vmatpush1.xpose.msra.mxu0 0.0
        %398 = vmatprep.subr.mxu0 0.0
        %399 = vmatpush1.xpose.msra.mxu0 0.0
        %400 = vmatprep.subr.mxu0 0.0
        %401 = vmatpush1.xpose.msra.mxu0 0.0
        %402 = vmatprep.subr.mxu0 0.0
        %403 = vmatpush1.xpose.msra.mxu0 0.0
        %404 = vmatprep.subr.mxu0 %v366
        %405 = vmatpush1.xpose.msra.mxu0 %v365
        %406 = vmatprep.subr.mxu0 %v364
        %407 = vmatpush1.xpose.msra.mxu0 %v363
        %408 = vmatprep.subr.mxu0 0.0
        %409 = vmatpush2.xpose.msra.mxu0 0.0
        %410 = vmatprep.subr.mxu0 0.0
        %411 = vmatpush2.xpose.msra.mxu0 0.0
        %412 = vmatprep.subr.mxu0 0.0
        %413 = vmatpush2.xpose.msra.mxu0 0.0
        %414 = vmatprep.subr.mxu0 0.0
        %415 = vmatpush2.xpose.msra.mxu0 0.0
        %416 = vmatprep.subr.mxu0 0.0
        %417 = vmatpush2.xpose.msra.mxu0 0.0
        %418 = vmatprep.subr.mxu0 0.0
        %419 = vmatpush2.xpose.msra.mxu0 0.0
        %420 = vmatprep.subr.mxu0 0.0
        %421 = vmatpush2.xpose.msra.mxu0 0.0
        %422 = vmatprep.subr.mxu0 0.0
        %423 = vmatpush2.xpose.msra.mxu0 0.0
        %424 = vmatprep.subr.mxu0 0.0
        %425 = vmatpush2.xpose.msra.mxu0 0.0
        %426 = vmatprep.subr.mxu0 0.0
        %427 = vmatpush2.xpose.msra.mxu0 0.0
        %428 = vmatprep.subr.mxu0 0.0
        %429 = vmatpush2.xpose.msra.mxu0 0.0
        %430 = vmatprep.subr.mxu0 0.0
        %431 = vmatpush2.xpose.msra.mxu0 0.0
        %432 = vmatprep.subr.mxu0 0.0
        %433 = vmatpush2.xpose.msra.mxu0 0.0
        %434 = vmatprep.subr.mxu0 0.0
        %435 = vmatpush2.xpose.msra.mxu0 0.0
        %436 = vmatprep.subr.mxu0 0.0
        %437 = vmatpush2.xpose.msra.mxu0 0.0
        %438 = vmatprep.subr.mxu0 0.0
        %439 = vmatpush2.xpose.msra.mxu0 0.0
        %440 = vmatprep.mubr.f32.mxu0 %v364
        %441 = vmatmul.mubr.f32.gmra.mxu0 %v363
        %v442 = vpop.f32.mrf.mxu0
        %v443 = vadd.f32 0.0, %v442
        %v444 = vpop.f32.mrf.mxu0
        %445 = vmatprep.mubr.f32.mxu0 %v366
        %446 = vmatmul.mubr.f32.gmra.mxu0 %v365
        %v447 = vpop.f32.mrf.mxu0
        %v448 = vadd.f32 0.0, %v447
        %v449 = vpop.f32.mrf.mxu0
        %450 = vdwg.mxu0
        %vm451 = vcmask 130048
        %452 = vst.msk [vmem:[%s229] sm:$0xff] %vm451, %v443
        %453 = vst.msk [vmem:[%s229 + $0x8] sm:$0xff] %vm451, %v448
        %p454 = scmp.lt.s32.totalorder %s23, 1
        %s455 = scalar_select %p454, %s23, 1
        %p456 = scmp.lt.s32.totalorder %s24, 0
        %s457 = scalar_select %p456, %s24, 0
        %s458 = smul.addr %s457, 2
        %s459 = smul.addr %s455, 2
        %s460 = sadd.s32 %s458, %s459
        %s461 = smul.addr %s460, 8
        %s462 = scalar_lea.vmem %s3, %s461
        %s463 = sand.u32 %s139, 1
        %s464 = scalar_lea.sflag [#allocation3], %s463
        %s465 = sand.u32 %s139, 1
        %s466 = smul.addr %s465, 16
        %s467 = scalar_lea.vmem [#allocation2], %s466
        // Predicated region
        $region33: #{tpu_custom_call.1} parent=31 // pred_check
          %p468 = pneg %p121
        $region34: #{tpu_custom_call.1} parent=31 // pred_check_branch
          %470 = sbr.rel (%p468) target = $region36
        $region35: #{tpu_custom_call.1} parent=31 // pred_region
          _
        $region36: #{tpu_custom_call.1} parent=31 // pred_fallthru
          _
        // Predicated region
        $region37: #{tpu_custom_call.1} parent=31 // pred_check
          %p471 = pneg %p149
        $region38: #{tpu_custom_call.1} parent=31 // pred_check_branch
          %473 = sbr.rel (%p471) target = $region40
        $region39: #{tpu_custom_call.1} parent=31 // pred_region
          %s475 = ssub.s32 256, 256
          %476 = vsyncadd %s464, %s475
          %s477 = smul.addr %s24, 2
          %s478 = smul.addr %s23, 2
          %s479 = sadd.s32 %s477, %s478
          %s480 = smul.addr %s479, 128
          %s481 = scalar_lea.hbm %s4, %s480
          %s482 = sshll.u32 %s467, 4
          %s483 = int_to_ptr.vmem [resolvable:$true] %s482
          %488 = dma.vmem_to_hbm [thread:$0]  %s483, 256, %s481, %s464, 128, 128, 8
        $region40: #{tpu_custom_call.1} parent=31 // pred_fallthru
          _
      $region32: #{tpu_custom_call.1} parent=5 // pred_fallthru
        _
      %p489 = scmp.le.s32.totalorder 2, %s14
      // Predicated region
      $region41: #{tpu_custom_call.1} parent=5 // pred_check
        %p490 = pneg %p489
      $region42: #{tpu_custom_call.1} parent=5 // pred_check_branch
        %492 = sbr.rel (%p490) target = $region44
      $region43: #{tpu_custom_call.1} parent=5 // pred_region
        %s493 = ssub.s32 %s14, 2
        // Predicated region
        $region45: #{tpu_custom_call.1} parent=43 // pred_check
          %p494 = pneg %p127
        $region46: #{tpu_custom_call.1} parent=43 // pred_check_branch
          %496 = sbr.rel (%p494) target = $region48
        $region47: #{tpu_custom_call.1} parent=43 // pred_region
          %p497 = scmp.lt.s32.totalorder %s25, 1
          %s498 = scalar_select %p497, %s25, 1
          %p499 = scmp.lt.s32.totalorder %s26, 0
          %s500 = scalar_select %p499, %s26, 0
          %s501 = smul.addr %s500, 2
          %s502 = smul.addr %s498, 2
          %s503 = sadd.s32 %s501, %s502
          %s504 = smul.addr %s503, 8
          %s505 = scalar_lea.vmem %s3, %s504
        $region48: #{tpu_custom_call.1} parent=43 // pred_fallthru
          _
        // Predicated region
        $region49: #{tpu_custom_call.1} parent=43 // pred_check
          %p506 = pneg %p155
        $region50: #{tpu_custom_call.1} parent=43 // pred_check_branch
          %508 = sbr.rel (%p506) target = $region52
        $region51: #{tpu_custom_call.1} parent=43 // pred_region
          %s509 = sand.u32 %s140, 1
          %s510 = scalar_lea.sflag [#allocation3], %s509
          %s511 = sand.u32 %s140, 1
          %s512 = smul.addr %s511, 16
          %s513 = scalar_lea.vmem [#allocation2], %s512
          %514 = dma.done %s510, 256
        $region52: #{tpu_custom_call.1} parent=43 // pred_fallthru
          _
      $region44: #{tpu_custom_call.1} parent=5 // pred_fallthru
        _
    $region6: #{tpu_custom_call.1} parent=1 // loop_footer
      %s18 = sadd.s32 1, %s14
    $region7: #{tpu_custom_call.1} parent=1 // loop_footer_branch
      %13 = sbr.rel target = $region3
    $region8: #{tpu_custom_call.1} parent=1 // loop_exit
      _
    %515 = vsyncpa [#allocation3], 1
    %s516 = scalar_lea.sflag [#allocation3], 1
    %517 = vsyncpa %s516, 1

</llo_original>
